<compile_context>
chip_gen: v7x
topology: tpu7x:2x2x1
jax: 0.10.0
libtpu: 0.0.40
codegen_flags: <defaults>
</compile_context>

<pallas_src>
import jax
import jax.numpy as jnp
from jax import lax
from jax.experimental import pallas as pl
from jax.experimental.pallas import tpu as pltpu


LANE = 128       # lane width: label axis padded to this for lane-dense stores
SUBLANE = 8      # f32 sublane granularity: batch tiles rounded to this
TB_CAP = 4096    # rows per batch tile (~1 MiB+ tiles needed for 85%+ HBM BW)
NEG_BIG = -1e30  # padded-label bias; only safe while logits/bias stay f32


def _round_up(n, m):
    return ((n + m - 1) // m) * m


def mlp_kernel(x_ref, w1_ref, b1_ref, w2_ref, b2_ref, o_ref):
    # x: (TB, H) f32.  w1: (H, H) bf16 (in, out).  b1: (1, H) f32.
    # w2: (H, Lp) bf16 (in, out).  b2: (1, Lp) f32 (-1e30 on padded lanes).
    # o: (TB, Lp) out dtype.
    x = x_ref[...].astype(jnp.bfloat16)

    # hidden_layer: x @ w1 (weights pre-transposed in the wrapper -> plain
    # (((1,),(0,))) contraction, no per-step transpose of a resident operand).
    h = lax.dot_general(
        x, w1_ref[...],
        dimension_numbers=(((1,), (0,)), ((), ())),
        preferred_element_type=jnp.float32,
    )
    h = jnp.tanh(h + b1_ref[...])  # f32 tanh / add (v5e EUP/VPU have no bf16)

    # F.dropout with training=False (module in eval mode) => identity.
    # TODO(synk): training-mode dropout would use pltpu.prng_seed /
    # pltpu.prng_random_bits to build a keep mask and scale by 1/(1-p).

    # decoder: padded label columns carry a -1e30 bias -> exp(...) == 0.
    logits = lax.dot_general(
        h.astype(jnp.bfloat16), w2_ref[...],
        dimension_numbers=(((1,), (0,)), ((), ())),
        preferred_element_type=jnp.float32,
    )
    logits = logits + b2_ref[...]

    # Numerically stable softmax over the label axis; normalization via the
    # otherwise-idle EUP reciprocal instead of a VPU divide.
    m = jnp.max(logits, axis=-1, keepdims=True)
    e = jnp.exp(logits - m)
    denom = jnp.sum(e, axis=-1, keepdims=True)
    o_ref[...] = (e * pl.reciprocal(denom, approx=True)).astype(o_ref.dtype)


def prepare_params(w1, b1, w2, b2):
    """One-time parameter packing (call at init time, NOT per forward).

    * casts weights to bf16 (halves the resident VMEM footprint / HBM stream)
    * pre-transposes PyTorch (out, in) weights to (in, out)
    * zero-pads the label axis of w2 to a lane-dense multiple of 128
    * bakes a -1e30 bias into padded label columns so they softmax to 0
    """
    H = w1.shape[1]
    L = w2.shape[0]
    Lp = _round_up(L, LANE)
    w1_p = w1.T.astype(jnp.bfloat16)                                  # (H, H)
    w2_p = jnp.zeros((H, Lp), jnp.bfloat16).at[:, :L].set(
        w2.T.astype(jnp.bfloat16))                                    # (H, Lp)
    b1_p = b1.reshape(1, H).astype(jnp.float32)                       # (1, H)
    b2_p = jnp.full((1, Lp), NEG_BIG, jnp.float32).at[0, :L].set(
        b2.astype(jnp.float32))                                       # (1, Lp)
    return {"w1": w1_p, "b1": b1_p, "w2": w2_p, "b2": b2_p, "label_size": L}


def _choose_tiling(B):
    """Pick (TB, n_steps, Bp): large tiles to amortize ~0.35us/step overhead,
    at least 2 grid steps when B allows (so "parallel" shards over v7x's two
    TensorCores), and TB = round_up(cdiv(B, n_steps), 8) so the last tile
    isn't mostly padding."""
    B8 = _round_up(B, SUBLANE)
    min_steps = 2 if B8 >= 2 * SUBLANE else 1
    n_steps = max(pl.cdiv(B8, TB_CAP), min_steps)
    TB = _round_up(pl.cdiv(B8, n_steps), SUBLANE)
    n_steps = pl.cdiv(B8, TB)
    return TB, n_steps, TB * n_steps


def mlp_forward(x, params, *, out_dtype=jnp.bfloat16, unpad=True):
    """Fused hidden Linear -> tanh -> (eval) dropout -> decoder -> softmax.

    x: (B, H). params: output of prepare_params(). Returns softmax probs of
    shape (B, L) if unpad=True, else the padded lane-dense (Bp, Lp) slab
    (padded label lanes are exactly 0; padded batch rows are finite junk).
    Consumers that can read the padded slab should pass unpad=False to skip
    an extra HBM pass over the output.
    """
    w1_p, b1_p, w2_p, b2_p = params["w1"], params["b1"], params["w2"], params["b2"]
    L = params["label_size"]
    B, H = x.shape
    Lp = w2_p.shape[1]

    TB, n_steps, Bp = _choose_tiling(B)
    x_pad = x if Bp == B else jnp.zeros((Bp, H), x.dtype).at[:B].set(x)

    def run(weight_buffers):
        # VMEM budget (no double counting): residents x weight_buffers,
        # double-buffered x/out tiles, plus in-body f32/bf16 intermediates.
        out_isize = jnp.dtype(out_dtype).itemsize
        weight_bytes = weight_buffers * (
            w1_p.size * 2 + w2_p.size * 2 + (b1_p.size + b2_p.size) * 4)
        io_bytes = 2 * (TB * H * x.dtype.itemsize + TB * Lp * out_isize)
        body_bytes = TB * H * 6 + TB * Lp * 6     # f32 + bf16 copies of h/logits
        working = weight_bytes + io_bytes + body_bytes
        try:
            vmem_cap = pltpu.get_tpu_info().vmem_capacity_bytes
        except Exception:
            vmem_cap = 64 << 20                   # v7x floor
        vmem_limit = min(max(int(working * 1.25), 32 << 20), vmem_cap - (2 << 20))

        res_mode = pl.Buffered(1) if weight_buffers == 1 else None
        resident = lambda shape: pl.BlockSpec(
            shape, lambda i: (0, 0), pipeline_mode=res_mode)

        return pl.pallas_call(
            mlp_kernel,
            out_shape=jax.ShapeDtypeStruct((Bp, Lp), out_dtype),
            grid=(n_steps,),
            in_specs=[
                pl.BlockSpec((TB, H), lambda i: (i, 0)),  # x tile, pipelined
                resident((H, H)),                         # w1 resident
                resident((1, H)),                         # b1 resident
                resident((H, Lp)),                        # w2 resident
                resident((1, Lp)),                        # b2 resident
            ],
            out_specs=pl.BlockSpec((TB, Lp), lambda i: (i, 0)),
            compiler_params=pltpu.CompilerParams(
                dimension_semantics=("parallel",),
                vmem_limit_bytes=int(vmem_limit),
            ),
        )(x_pad, w1_p, b1_p, w2_p, b2_p)

    try:
        out_pad = run(weight_buffers=1)   # single-buffer resident operands
    except Exception:
        out_pad = run(weight_buffers=2)   # fallback: default double buffering

    return out_pad[:B, :L] if unpad else out_pad


def reference_forward(x, w1, b1, w2, b2):
    h = jnp.tanh(x @ w1.T + b1)
    logits = h @ w2.T + b2
    return jax.nn.softmax(logits, axis=1)


if __name__ == "__main__":
    batch = 8
    hidden_dim = 32
    label_size = 16

    key = jax.random.PRNGKey(0)
    k_x, k_w1, k_b1, k_w2, k_b2 = jax.random.split(key, 5)

    # Deterministic init mimicking nn.Linear's U(-1/sqrt(in), 1/sqrt(in)).
    bound = 1.0 / (hidden_dim ** 0.5)
    w1 = jax.random.uniform(k_w1, (hidden_dim, hidden_dim), jnp.float32, -bound, bound)
    b1 = jax.random.uniform(k_b1, (hidden_dim,), jnp.float32, -bound, bound)
    w2 = jax.random.uniform(k_w2, (label_size, hidden_dim), jnp.float32, -bound, bound)
    b2 = jax.random.uniform(k_b2, (label_size,), jnp.float32, -bound, bound)
    x = jax.random.normal(k_x, (batch, hidden_dim), jnp.float32)

    # One-time parameter packing (init time), not per forward call.
    params = prepare_params(w1, b1, w2, b2)

    # Consumer reads the padded lane-dense slab (no wrapper-side slice pass).
    out_pad = mlp_forward(x, params, unpad=False)
    out_pad = jax.block_until_ready(out_pad)

    out = jnp.asarray(out_pad[:batch, :label_size], jnp.float32)
    ref = reference_forward(x, w1, b1, w2, b2)

    assert out.shape == (batch, label_size)
    # bf16 MXU operands + bf16 output store + approx EUP reciprocal.
    assert jnp.allclose(out, ref, atol=3e-2, rtol=3e-2), "mismatch vs reference"
    assert jnp.allclose(jnp.sum(out, axis=1), 1.0, atol=2e-2), "softmax rows must sum to ~1"
    assert jnp.all(out_pad[:batch, label_size:] == 0), "padded label lanes must be exactly 0"

    print("KERNEL_OK")
</pallas_src>

<mosaic_0001>
module attributes {stable_mosaic.version = 11 : i64} {
  func.func @mlp_kernel(%arg0: i32, %arg1: memref<8x32xf32, #tpu.memory_space<vmem>>, %arg2: memref<32x32xbf16, #tpu.memory_space<vmem>>, %arg3: memref<1x32xf32, #tpu.memory_space<vmem>>, %arg4: memref<32x128xbf16, #tpu.memory_space<vmem>>, %arg5: memref<1x128xf32, #tpu.memory_space<vmem>>, %arg6: memref<8x128xbf16, #tpu.memory_space<vmem>>) attributes {dimension_semantics = [#tpu.dimension_semantics<parallel>], iteration_bounds = array<i64: 1>, scalar_prefetch = 0 : i64, scratch_operands = 0 : i64, tpu.core_type = #tpu.core_type<tc>, window_params = [{transform_indices = @transform_0, window_bounds = array<i64: 8, 32>}, {pipeline_mode = #tpu.pipeline_mode<synchronous>, transform_indices = @transform_1, window_bounds = array<i64: 32, 32>}, {pipeline_mode = #tpu.pipeline_mode<synchronous>, transform_indices = @transform_2, window_bounds = array<i64: 1, 32>}, {pipeline_mode = #tpu.pipeline_mode<synchronous>, transform_indices = @transform_3, window_bounds = array<i64: 32, 128>}, {pipeline_mode = #tpu.pipeline_mode<synchronous>, transform_indices = @transform_4, window_bounds = array<i64: 1, 128>}, {transform_indices = @transform_5, window_bounds = array<i64: 8, 128>}]} {
    %c0 = arith.constant 0 : index
    %c0_0 = arith.constant 0 : index
    %0 = vector.load %arg1[%c0, %c0_0] : memref<8x32xf32, #tpu.memory_space<vmem>>, vector<8x32xf32>
    %1 = arith.truncf %0 : vector<8x32xf32> to vector<8x32xbf16>
    %c0_1 = arith.constant 0 : index
    %c0_2 = arith.constant 0 : index
    %2 = vector.load %arg2[%c0_1, %c0_2] : memref<32x32xbf16, #tpu.memory_space<vmem>>, vector<32x32xbf16>
    %cst = arith.constant dense<0.000000e+00> : vector<8x32xf32>
    %3 = tpu.matmul %1, %2, %cst {dimension_numbers = #tpu.dot_dimension_numbers<[1], [0], [0], [1], [0, 0, 1, 1], [], []>} : vector<8x32xbf16>, vector<32x32xbf16>, vector<8x32xf32> -> vector<8x32xf32>
    %c0_3 = arith.constant 0 : index
    %c0_4 = arith.constant 0 : index
    %4 = vector.load %arg3[%c0_3, %c0_4] : memref<1x32xf32, #tpu.memory_space<vmem>>, vector<1x32xf32>
    %5 = vector.broadcast %4 : vector<1x32xf32> to vector<8x32xf32>
    %6 = arith.addf %3, %5 : vector<8x32xf32>
    %7 = math.tanh %6 : vector<8x32xf32>
    %8 = arith.truncf %7 : vector<8x32xf32> to vector<8x32xbf16>
    %c0_5 = arith.constant 0 : index
    %c0_6 = arith.constant 0 : index
    %9 = vector.load %arg4[%c0_5, %c0_6] : memref<32x128xbf16, #tpu.memory_space<vmem>>, vector<32x128xbf16>
    %cst_7 = arith.constant dense<0.000000e+00> : vector<8x128xf32>
    %10 = tpu.matmul %8, %9, %cst_7 {dimension_numbers = #tpu.dot_dimension_numbers<[1], [0], [0], [1], [0, 0, 1, 1], [], []>} : vector<8x32xbf16>, vector<32x128xbf16>, vector<8x128xf32> -> vector<8x128xf32>
    %c0_8 = arith.constant 0 : index
    %c0_9 = arith.constant 0 : index
    %11 = vector.load %arg5[%c0_8, %c0_9] : memref<1x128xf32, #tpu.memory_space<vmem>>, vector<1x128xf32>
    %12 = vector.broadcast %11 : vector<1x128xf32> to vector<8x128xf32>
    %13 = arith.addf %10, %12 : vector<8x128xf32>
    %cst_10 = arith.constant dense<0xFF800000> : vector<8xf32>
    %14 = vector.multi_reduction <maximumf>, %13, %cst_10 [1] : vector<8x128xf32> to vector<8xf32>
    %15 = vector.shape_cast %14 : vector<8xf32> to vector<8x1xf32>
    %16 = vector.broadcast %15 : vector<8x1xf32> to vector<8x128xf32>
    %17 = arith.subf %13, %16 : vector<8x128xf32>
    %18 = math.exp %17 : vector<8x128xf32>
    %cst_11 = arith.constant dense<0.000000e+00> : vector<8xf32>
    %19 = vector.multi_reduction <add>, %18, %cst_11 [1] : vector<8x128xf32> to vector<8xf32>
    %20 = vector.shape_cast %19 : vector<8xf32> to vector<8x1xf32>
    %21 = tpu.reciprocal %20 {approx = true} : vector<8x1xf32> -> vector<8x1xf32>
    %22 = vector.broadcast %21 : vector<8x1xf32> to vector<8x128xf32>
    %23 = arith.mulf %18, %22 : vector<8x128xf32>
    %24 = arith.truncf %23 : vector<8x128xf32> to vector<8x128xbf16>
    %c0_12 = arith.constant 0 : index
    %c0_13 = arith.constant 0 : index
    %25 = vector.load %arg6[%c0_12, %c0_13] : memref<8x128xbf16, #tpu.memory_space<vmem>>, vector<8x128xbf16>
    tpu.vector_store %arg6[%c0_12, %c0_13], %24 {strides = array<i32>} : memref<8x128xbf16, #tpu.memory_space<vmem>>, vector<8x128xbf16>,
    return
  }
  func.func @transform_0(%arg0: i32) -> (i32, i32) {
    %c0_i32 = arith.constant 0 : i32
    %c0_i32_0 = arith.constant 0 : i32
    return %arg0, %c0_i32 : i32, i32
  }
  func.func @transform_1(%arg0: i32) -> (i32, i32) {
    %c0_i32 = arith.constant 0 : i32
    %c0_i32_0 = arith.constant 0 : i32
    %c0_i32_1 = arith.constant 0 : i32
    return %c0_i32, %c0_i32_0 : i32, i32
  }
  func.func @transform_2(%arg0: i32) -> (i32, i32) {
    %c0_i32 = arith.constant 0 : i32
    %c0_i32_0 = arith.constant 0 : i32
    %c0_i32_1 = arith.constant 0 : i32
    return %c0_i32, %c0_i32_0 : i32, i32
  }
  func.func @transform_3(%arg0: i32) -> (i32, i32) {
    %c0_i32 = arith.constant 0 : i32
    %c0_i32_0 = arith.constant 0 : i32
    %c0_i32_1 = arith.constant 0 : i32
    return %c0_i32, %c0_i32_0 : i32, i32
  }
  func.func @transform_4(%arg0: i32) -> (i32, i32) {
    %c0_i32 = arith.constant 0 : i32
    %c0_i32_0 = arith.constant 0 : i32
    %c0_i32_1 = arith.constant 0 : i32
    return %c0_i32, %c0_i32_0 : i32, i32
  }
  func.func @transform_5(%arg0: i32) -> (i32, i32) {
    %c0_i32 = arith.constant 0 : i32
    %c0_i32_0 = arith.constant 0 : i32
    return %arg0, %c0_i32 : i32, i32
  }
}

module attributes {stable_mosaic.version = 11 : i64} {
  func.func @mlp_kernel(%arg0: i32, %arg1: memref<8x32xf32, #tpu.memory_space<vmem>>, %arg2: memref<32x32xbf16, #tpu.memory_space<vmem>>, %arg3: memref<1x32xf32, #tpu.memory_space<vmem>>, %arg4: memref<32x128xbf16, #tpu.memory_space<vmem>>, %arg5: memref<1x128xf32, #tpu.memory_space<vmem>>, %arg6: memref<8x128xbf16, #tpu.memory_space<vmem>>) attributes {dimension_semantics = [#tpu.dimension_semantics<parallel>], iteration_bounds = array<i64: 1>, scalar_prefetch = 0 : i64, scratch_operands = 0 : i64, tpu.core_type = #tpu.core_type<tc>, window_params = [{transform_indices = @transform_0, window_bounds = array<i64: 8, 32>}, {pipeline_mode = #tpu.pipeline_mode<synchronous>, transform_indices = @transform_1, window_bounds = array<i64: 32, 32>}, {pipeline_mode = #tpu.pipeline_mode<synchronous>, transform_indices = @transform_2, window_bounds = array<i64: 1, 32>}, {pipeline_mode = #tpu.pipeline_mode<synchronous>, transform_indices = @transform_3, window_bounds = array<i64: 32, 128>}, {pipeline_mode = #tpu.pipeline_mode<synchronous>, transform_indices = @transform_4, window_bounds = array<i64: 1, 128>}, {transform_indices = @transform_5, window_bounds = array<i64: 8, 128>}]} {
    %c0 = arith.constant 0 : index
    %c0_0 = arith.constant 0 : index
    %0 = vector.load %arg1[%c0, %c0_0] : memref<8x32xf32, #tpu.memory_space<vmem>>, vector<8x32xf32>
    %1 = arith.truncf %0 : vector<8x32xf32> to vector<8x32xbf16>
    %c0_1 = arith.constant 0 : index
    %c0_2 = arith.constant 0 : index
    %2 = vector.load %arg2[%c0_1, %c0_2] : memref<32x32xbf16, #tpu.memory_space<vmem>>, vector<32x32xbf16>
    %cst = arith.constant dense<0.000000e+00> : vector<8x32xf32>
    %3 = tpu.matmul %1, %2, %cst {dimension_numbers = #tpu.dot_dimension_numbers<[1], [0], [0], [1], [0, 0, 1, 1], [], []>} : vector<8x32xbf16>, vector<32x32xbf16>, vector<8x32xf32> -> vector<8x32xf32>
    %c0_3 = arith.constant 0 : index
    %c0_4 = arith.constant 0 : index
    %4 = vector.load %arg3[%c0_3, %c0_4] : memref<1x32xf32, #tpu.memory_space<vmem>>, vector<1x32xf32>
    %5 = vector.broadcast %4 : vector<1x32xf32> to vector<8x32xf32>
    %6 = arith.addf %3, %5 : vector<8x32xf32>
    %7 = math.tanh %6 : vector<8x32xf32>
    %8 = arith.truncf %7 : vector<8x32xf32> to vector<8x32xbf16>
    %c0_5 = arith.constant 0 : index
    %c0_6 = arith.constant 0 : index
    %9 = vector.load %arg4[%c0_5, %c0_6] : memref<32x128xbf16, #tpu.memory_space<vmem>>, vector<32x128xbf16>
    %cst_7 = arith.constant dense<0.000000e+00> : vector<8x128xf32>
    %10 = tpu.matmul %8, %9, %cst_7 {dimension_numbers = #tpu.dot_dimension_numbers<[1], [0], [0], [1], [0, 0, 1, 1], [], []>} : vector<8x32xbf16>, vector<32x128xbf16>, vector<8x128xf32> -> vector<8x128xf32>
    %c0_8 = arith.constant 0 : index
    %c0_9 = arith.constant 0 : index
    %11 = vector.load %arg5[%c0_8, %c0_9] : memref<1x128xf32, #tpu.memory_space<vmem>>, vector<1x128xf32>
    %12 = vector.broadcast %11 : vector<1x128xf32> to vector<8x128xf32>
    %13 = arith.addf %10, %12 : vector<8x128xf32>
    %cst_10 = arith.constant dense<0xFF800000> : vector<8xf32>
    %14 = vector.multi_reduction <maximumf>, %13, %cst_10 [1] : vector<8x128xf32> to vector<8xf32>
    %15 = vector.shape_cast %14 : vector<8xf32> to vector<8x1xf32>
    %16 = vector.broadcast %15 : vector<8x1xf32> to vector<8x128xf32>
    %17 = arith.subf %13, %16 : vector<8x128xf32>
    %18 = math.exp %17 : vector<8x128xf32>
    %cst_11 = arith.constant dense<0.000000e+00> : vector<8xf32>
    %19 = vector.multi_reduction <add>, %18, %cst_11 [1] : vector<8x128xf32> to vector<8xf32>
    %20 = vector.shape_cast %19 : vector<8xf32> to vector<8x1xf32>
    %21 = tpu.reciprocal %20 {approx = true} : vector<8x1xf32> -> vector<8x1xf32>
    %22 = vector.broadcast %21 : vector<8x1xf32> to vector<8x128xf32>
    %23 = arith.mulf %18, %22 : vector<8x128xf32>
    %24 = arith.truncf %23 : vector<8x128xf32> to vector<8x128xbf16>
    %c0_12 = arith.constant 0 : index
    %c0_13 = arith.constant 0 : index
    %25 = vector.load %arg6[%c0_12, %c0_13] : memref<8x128xbf16, #tpu.memory_space<vmem>>, vector<8x128xbf16>
    tpu.vector_store %arg6[%c0_12, %c0_13], %24 {strides = array<i32>} : memref<8x128xbf16, #tpu.memory_space<vmem>>, vector<8x128xbf16>,
    return
  }
  func.func @transform_0(%arg0: i32) -> (i32, i32) {
    %c0_i32 = arith.constant 0 : i32
    %c0_i32_0 = arith.constant 0 : i32
    return %arg0, %c0_i32 : i32, i32
  }
  func.func @transform_1(%arg0: i32) -> (i32, i32) {
    %c0_i32 = arith.constant 0 : i32
    %c0_i32_0 = arith.constant 0 : i32
    %c0_i32_1 = arith.constant 0 : i32
    return %c0_i32, %c0_i32_0 : i32, i32
  }
  func.func @transform_2(%arg0: i32) -> (i32, i32) {
    %c0_i32 = arith.constant 0 : i32
    %c0_i32_0 = arith.constant 0 : i32
    %c0_i32_1 = arith.constant 0 : i32
    return %c0_i32, %c0_i32_0 : i32, i32
  }
  func.func @transform_3(%arg0: i32) -> (i32, i32) {
    %c0_i32 = arith.constant 0 : i32
    %c0_i32_0 = arith.constant 0 : i32
    %c0_i32_1 = arith.constant 0 : i32
    return %c0_i32, %c0_i32_0 : i32, i32
  }
  func.func @transform_4(%arg0: i32) -> (i32, i32) {
    %c0_i32 = arith.constant 0 : i32
    %c0_i32_0 = arith.constant 0 : i32
    %c0_i32_1 = arith.constant 0 : i32
    return %c0_i32, %c0_i32_0 : i32, i32
  }
  func.func @transform_5(%arg0: i32) -> (i32, i32) {
    %c0_i32 = arith.constant 0 : i32
    %c0_i32_0 = arith.constant 0 : i32
    return %arg0, %c0_i32 : i32, i32
  }
}

</mosaic_0001>

<llo_original>
// kernel: tpu_custom_call.1
$region0: #{tpu_custom_call.1}
  #allocation0 [shape = 'u32[]', space=smem, size = 0x4, offset = 0x4, fixed_abs, tag = 'smem constant byte address 0x4 - core index']
  #allocation1 [shape = 'u32[144,128]{1,0:T(1,128)}', space=vmem, size = 0x12000, scoped, tag = 'internal scratch']
  %s0 = inlined_call_operand.hbm [shape: f32[8,32], index: 0, kind: input, shape index: {}]
  %s1 = inlined_call_operand.hbm [shape: bf16[32,32], index: 1, kind: input, shape index: {}]
  %s2 = inlined_call_operand.vmem [shape: f32[1,32], index: 2, kind: input, shape index: {}]
  %s3 = inlined_call_operand.hbm [shape: bf16[32,128], index: 3, kind: input, shape index: {}]
  %s4 = inlined_call_operand.vmem [shape: f32[1,128], index: 4, kind: input, shape index: {}]
  %s5 = inlined_call_operand.hbm [shape: bf16[8,128], index: 5, kind: output, shape index: {}]
  %s6 = sld [smem:[#allocation0]]
  $region42: #{tpu_custom_call.1} parent=0
    _
  %s8 = ssub.s32 1, %s6
  %s9 = scalar_select 0, %s8, %s6
  $region1: #{tpu_custom_call.1} parent=0
    #allocation2 [shape = 'u8[4096]{0}', space=vmem, size = 0x1000, scoped, tag = 'input window, operand 0, single buffered']
    #allocation3 [shape = 's32[1]{0}', space=sflag, size = 0x4, scoped, tag = 'scoped memory for tpu_custom_call.1']
    #allocation4 [shape = 's32[1]{0}', space=sflag, size = 0x4, scoped, tag = 'scoped memory for tpu_custom_call.1']
    #allocation5 [shape = 'u8[8192]{0}', space=vmem, size = 0x2000, scoped, tag = 'input window, operand 1, single buffered']
    #allocation6 [shape = 's32[1]{0}', space=sflag, size = 0x4, scoped, tag = 'scoped memory for tpu_custom_call.1']
    #allocation7 [shape = 'u8[8192]{0}', space=vmem, size = 0x2000, scoped, tag = 'input window, operand 3, single buffered']
    #allocation8 [shape = 'u8[2048]{0}', space=vmem, size = 0x800, scoped, tag = 'output window, operand 0, single buffered']
    %10 = vsyncpa [#allocation3], 0
    %11 = vsyncpa [#allocation6], 0
    %12 = vsyncpa [#allocation4], 0
    // Predicated region
    $region2: #{tpu_custom_call.1} parent=1 // pred_check
      _
    $region3: #{tpu_custom_call.1} parent=1 // pred_check_branch
      %14 = sbr.rel (0) target = $region5
    $region4: #{tpu_custom_call.1} parent=1 // pred_region
      %s16 = ssub.s32 128, 128
      %17 = vsyncadd [#allocation3], %s16
      %s19 = sshll.u32 [#allocation2], 4
      %s20 = int_to_ptr.vmem [resolvable:$true] %s19
      %22 = dma.hbm_to_vmem [thread:$0]  %s0, 128, %s20, [#allocation3]
    $region5: #{tpu_custom_call.1} parent=1 // pred_fallthru
      _
    // Predicated region
    $region6: #{tpu_custom_call.1} parent=1 // pred_check
      _
    $region7: #{tpu_custom_call.1} parent=1 // pred_check_branch
      %24 = sbr.rel (0) target = $region9
    $region8: #{tpu_custom_call.1} parent=1 // pred_region
      %s26 = ssub.s32 256, 256
      %27 = vsyncadd [#allocation6], %s26
      %s28 = sshll.u32 [#allocation5], 4
      %s29 = int_to_ptr.vmem [resolvable:$true] %s28
      %34 = dma.hbm_to_vmem [thread:$0]  %s1, 256, %s29, [#allocation6], 64, 64, 4
    $region9: #{tpu_custom_call.1} parent=1 // pred_fallthru
      _
    // Predicated region
    $region10: #{tpu_custom_call.1} parent=1 // pred_check
      _
    $region11: #{tpu_custom_call.1} parent=1 // pred_check_branch
      %36 = sbr.rel (0) target = $region13
    $region12: #{tpu_custom_call.1} parent=1 // pred_region
      _
    $region13: #{tpu_custom_call.1} parent=1 // pred_fallthru
      _
    // Predicated region
    $region14: #{tpu_custom_call.1} parent=1 // pred_check
      _
    $region15: #{tpu_custom_call.1} parent=1 // pred_check_branch
      %38 = sbr.rel (0) target = $region17
    $region16: #{tpu_custom_call.1} parent=1 // pred_region
      %s40 = ssub.s32 256, 256
      %41 = vsyncadd [#allocation6], %s40
      %s42 = sshll.u32 [#allocation7], 4
      %s43 = int_to_ptr.vmem [resolvable:$true] %s42
      %48 = dma.hbm_to_vmem [thread:$0]  %s3, 256, %s43, [#allocation6], 64, 64, 4
    $region17: #{tpu_custom_call.1} parent=1 // pred_fallthru
      _
    // Predicated region
    $region18: #{tpu_custom_call.1} parent=1 // pred_check
      _
    $region19: #{tpu_custom_call.1} parent=1 // pred_check_branch
      %50 = sbr.rel (0) target = $region21
    $region20: #{tpu_custom_call.1} parent=1 // pred_region
      _
    $region21: #{tpu_custom_call.1} parent=1 // pred_fallthru
      _
    // Predicated region
    $region22: #{tpu_custom_call.1} parent=1 // pred_check
      _
    $region23: #{tpu_custom_call.1} parent=1 // pred_check_branch
      %52 = sbr.rel (0) target = $region25
    $region24: #{tpu_custom_call.1} parent=1 // pred_region
      %53 = dma.done [#allocation3], 128
    $region25: #{tpu_custom_call.1} parent=1 // pred_fallthru
      _
    // Predicated region
    $region26: #{tpu_custom_call.1} parent=1 // pred_check
      _
    $region27: #{tpu_custom_call.1} parent=1 // pred_check_branch
      %55 = sbr.rel (0) target = $region29
    $region28: #{tpu_custom_call.1} parent=1 // pred_region
      %56 = dma.done [#allocation6], 256
    $region29: #{tpu_custom_call.1} parent=1 // pred_fallthru
      _
    // Predicated region
    $region30: #{tpu_custom_call.1} parent=1 // pred_check
      _
    $region31: #{tpu_custom_call.1} parent=1 // pred_check_branch
      %58 = sbr.rel (0) target = $region33
    $region32: #{tpu_custom_call.1} parent=1 // pred_region
      %59 = dma.done [#allocation6], 256
    $region33: #{tpu_custom_call.1} parent=1 // pred_fallthru
      _
    %v61 = vld [vmem:[#allocation2] sm:$0xff]
    %v62 = vpack.c.bf16 %v61, %v61
    %v63 = vld [vmem:[#allocation5] sm:$0xf]
    %v64 = vld [vmem:[#allocation5 + $0x4] sm:$0xf]
    %v65 = vld [vmem:[#allocation5 + $0x8] sm:$0xf]
    %v66 = vld [vmem:[#allocation5 + $0xc] sm:$0xf]
    %v67 = vld [vmem:[%s2] sm:$0x1]
    %v69 = vlaneseq
    %v70 = vshrl.u32 %v69, 7
    %v71 = vsub.s32 0, %v70
    %v72 = vrot.slane %v67, %v71
    %v78 = vunpack.c.l.b16 %v63
    %v79 = vunpack.c.l.b16 %v64
    %v80 = vunpack.c.l.b16 %v65
    %v81 = vunpack.c.l.b16 %v66
    %v82 = vpack.c.b16 %v79, %v78
    %v83 = vpack.c.b16 %v81, %v80
    %vm86 = vcmask 261120
    %v88 = vsel %vm86, %v62, 0
    %90 = vmatprep.subr.bf16.mxu0 0
    %91 = vmatpush1.bf16.msra.mxu0 %v82
    %92 = vmatprep.subr.bf16.mxu0 0
    %93 = vmatpush1.bf16.msra.mxu0 %v83
    %94 = vmatprep.subr.bf16.mxu0 0
    %95 = vmatpush1.bf16.msra.mxu0 0
    %96 = vmatprep.subr.bf16.mxu0 0
    %97 = vmatpush1.bf16.msra.mxu0 0
    %98 = vmatprep.subr.bf16.mxu0 0
    %99 = vmatpush1.bf16.msra.mxu0 0
    %100 = vmatprep.subr.bf16.mxu0 0
    %101 = vmatpush1.bf16.msra.mxu0 0
    %102 = vmatprep.subr.bf16.mxu0 0
    %103 = vmatpush1.bf16.msra.mxu0 0
    %104 = vmatprep.subr.bf16.mxu0 0
    %105 = vmatpush1.bf16.msra.mxu0 0
    %106 = vmatprep.subr.bf16.mxu0 0
    %107 = vmatpush1.bf16.msra.mxu0 0
    %108 = vmatprep.subr.bf16.mxu0 0
    %109 = vmatpush1.bf16.msra.mxu0 0
    %110 = vmatprep.subr.bf16.mxu0 0
    %111 = vmatpush1.bf16.msra.mxu0 0
    %112 = vmatprep.subr.bf16.mxu0 0
    %113 = vmatpush1.bf16.msra.mxu0 0
    %114 = vmatprep.subr.bf16.mxu0 0
    %115 = vmatpush1.bf16.msra.mxu0 0
    %116 = vmatprep.subr.bf16.mxu0 0
    %117 = vmatpush1.bf16.msra.mxu0 0
    %118 = vmatprep.subr.bf16.mxu0 0
    %119 = vmatpush1.bf16.msra.mxu0 0
    %120 = vmatprep.subr.bf16.mxu0 0
    %121 = vmatpush1.bf16.msra.mxu0 0
    %122 = vmatprep.mubr.bf16.mxu0 0
    %123 = vmatmul.mubr.bf16.gmra.mrb[0].mxu0 %v88
    %v124 = vpop.f32.mrb[0].mxu0
    %v125 = vadd.f32 %v72, %v124
    %v126 = vpop.f32.mrb[0].mxu0
    %v127 = vpop.f32.mrb[0].mxu0
    %v128 = vpop.f32.mrb[0].mxu0
    %129 = vdwg.mxu0
    %v130 = vtanh.pop %v125
    %v131 = vpack.c.bf16 %v130, %v130
    %v132 = vld [vmem:[#allocation7] sm:$0xf]
    %v133 = vld [vmem:[#allocation7 + $0x4] sm:$0xf]
    %v134 = vld [vmem:[#allocation7 + $0x8] sm:$0xf]
    %v135 = vld [vmem:[#allocation7 + $0xc] sm:$0xf]
    %v136 = vld [vmem:[%s4] sm:$0x1]
    %v138 = vlaneseq
    %v139 = vshrl.u32 %v138, 7
    %v140 = vsub.s32 0, %v139
    %v141 = vrot.slane %v136, %v140
    %v147 = vunpack.c.l.b16 %v132
    %v148 = vunpack.c.l.b16 %v133
    %v149 = vunpack.c.l.b16 %v134
    %v150 = vunpack.c.l.b16 %v135
    %v151 = vpack.c.b16 %v148, %v147
    %v152 = vpack.c.b16 %v150, %v149
    %v156 = vsel %vm86, %v131, 0
    %158 = vmatprep.subr.bf16.mxu0 0
    %159 = vmatpush1.bf16.msra.mxu0 %v151
    %160 = vmatprep.subr.bf16.mxu0 0
    %161 = vmatpush1.bf16.msra.mxu0 %v152
    %162 = vmatprep.subr.bf16.mxu0 0
    %163 = vmatpush1.bf16.msra.mxu0 0
    %164 = vmatprep.subr.bf16.mxu0 0
    %165 = vmatpush1.bf16.msra.mxu0 0
    %166 = vmatprep.subr.bf16.mxu0 0
    %167 = vmatpush1.bf16.msra.mxu0 0
    %168 = vmatprep.subr.bf16.mxu0 0
    %169 = vmatpush1.bf16.msra.mxu0 0
    %170 = vmatprep.subr.bf16.mxu0 0
    %171 = vmatpush1.bf16.msra.mxu0 0
    %172 = vmatprep.subr.bf16.mxu0 0
    %173 = vmatpush1.bf16.msra.mxu0 0
    %174 = vmatprep.subr.bf16.mxu0 0
    %175 = vmatpush1.bf16.msra.mxu0 0
    %176 = vmatprep.subr.bf16.mxu0 0
    %177 = vmatpush1.bf16.msra.mxu0 0
    %178 = vmatprep.subr.bf16.mxu0 0
    %179 = vmatpush1.bf16.msra.mxu0 0
    %180 = vmatprep.subr.bf16.mxu0 0
    %181 = vmatpush1.bf16.msra.mxu0 0
    %182 = vmatprep.subr.bf16.mxu0 0
    %183 = vmatpush1.bf16.msra.mxu0 0
    %184 = vmatprep.subr.bf16.mxu0 0
    %185 = vmatpush1.bf16.msra.mxu0 0
    %186 = vmatprep.subr.bf16.mxu0 0
    %187 = vmatpush1.bf16.msra.mxu0 0
    %188 = vmatprep.subr.bf16.mxu0 0
    %189 = vmatpush1.bf16.msra.mxu0 0
    %190 = vmatprep.mubr.bf16.mxu0 0
    %191 = vmatmul.mubr.bf16.gmra.mrb[0].mxu0 %v156
    %v192 = vpop.f32.mrb[0].mxu0
    %v193 = vadd.f32 %v141, %v192
    %v194 = vpop.f32.mrb[0].mxu0
    %v195 = vpop.f32.mrb[0].mxu0
    %v196 = vpop.f32.mrb[0].mxu0
    %197 = vdwg.mxu0
    %198 = vmax.xlane.f32.xlu0 %v193
    %v199 = vpop.xlane.xlu0 %198
    %v200 = vsub.f32 %v193, %v199
    %v201 = vmul.f32 %v200, 1.442695
    %v202 = vpow.pop %v201
    %203 = vadd.xlane.f32.xlu0 %v202
    %v204 = vpop.xlane.xlu0 %203
    %v205 = vrcp.pop %v204
    %v206 = vmul.f32 %v202, %v205
    %v207 = vpack.c.bf16 %v206, %v206
    %208 = vst [vmem:[#allocation8] sm:$0xf] %v207
    // Predicated region
    $region34: #{tpu_custom_call.1} parent=1 // pred_check
      _
    $region35: #{tpu_custom_call.1} parent=1 // pred_check_branch
      %210 = sbr.rel (0) target = $region37
    $region36: #{tpu_custom_call.1} parent=1 // pred_region
      %s212 = ssub.s32 64, 64
      %213 = vsyncadd [#allocation4], %s212
      %s215 = sshll.u32 [#allocation8], 4
      %s216 = int_to_ptr.vmem [resolvable:$true] %s215
      %218 = dma.vmem_to_hbm [thread:$0]  %s216, 64, %s5, [#allocation4]
    $region37: #{tpu_custom_call.1} parent=1 // pred_fallthru
      _
    // Predicated region
    $region38: #{tpu_custom_call.1} parent=1 // pred_check
      _
    $region39: #{tpu_custom_call.1} parent=1 // pred_check_branch
      %220 = sbr.rel (0) target = $region41
    $region40: #{tpu_custom_call.1} parent=1 // pred_region
      %221 = dma.done [#allocation4], 64
    $region41: #{tpu_custom_call.1} parent=1 // pred_fallthru
      _
    %222 = vsyncpa [#allocation3], 1
    %223 = vsyncpa [#allocation6], 1
    %224 = vsyncpa [#allocation4], 1

// kernel: tpu_custom_call.1
$region0: #{tpu_custom_call.1}
  #allocation0 [shape = 'u32[]', space=smem, size = 0x4, offset = 0x4, fixed_abs, tag = 'smem constant byte address 0x4 - core index']
  #allocation1 [shape = 'u32[144,128]{1,0:T(1,128)}', space=vmem, size = 0x12000, scoped, tag = 'internal scratch']
  %s0 = inlined_call_operand.hbm [shape: f32[8,32], index: 0, kind: input, shape index: {}]
  %s1 = inlined_call_operand.hbm [shape: bf16[32,32], index: 1, kind: input, shape index: {}]
  %s2 = inlined_call_operand.vmem [shape: f32[1,32], index: 2, kind: input, shape index: {}]
  %s3 = inlined_call_operand.hbm [shape: bf16[32,128], index: 3, kind: input, shape index: {}]
  %s4 = inlined_call_operand.vmem [shape: f32[1,128], index: 4, kind: input, shape index: {}]
  %s5 = inlined_call_operand.hbm [shape: bf16[8,128], index: 5, kind: output, shape index: {}]
  %s6 = sld [smem:[#allocation0]]
  $region42: #{tpu_custom_call.1} parent=0
    _
  %s8 = ssub.s32 1, %s6
  %s9 = scalar_select 0, %s8, %s6
  $region1: #{tpu_custom_call.1} parent=0
    #allocation2 [shape = 'u8[4096]{0}', space=vmem, size = 0x1000, scoped, tag = 'input window, operand 0, single buffered']
    #allocation3 [shape = 's32[1]{0}', space=sflag, size = 0x4, scoped, tag = 'scoped memory for tpu_custom_call.1']
    #allocation4 [shape = 's32[1]{0}', space=sflag, size = 0x4, scoped, tag = 'scoped memory for tpu_custom_call.1']
    #allocation5 [shape = 'u8[8192]{0}', space=vmem, size = 0x2000, scoped, tag = 'input window, operand 1, single buffered']
    #allocation6 [shape = 's32[1]{0}', space=sflag, size = 0x4, scoped, tag = 'scoped memory for tpu_custom_call.1']
    #allocation7 [shape = 'u8[8192]{0}', space=vmem, size = 0x2000, scoped, tag = 'input window, operand 3, single buffered']
    #allocation8 [shape = 'u8[2048]{0}', space=vmem, size = 0x800, scoped, tag = 'output window, operand 0, single buffered']
    %10 = vsyncpa [#allocation3], 0
    %11 = vsyncpa [#allocation6], 0
    %12 = vsyncpa [#allocation4], 0
    // Predicated region
    $region2: #{tpu_custom_call.1} parent=1 // pred_check
      _
    $region3: #{tpu_custom_call.1} parent=1 // pred_check_branch
      %14 = sbr.rel (0) target = $region5
    $region4: #{tpu_custom_call.1} parent=1 // pred_region
      %s16 = ssub.s32 128, 128
      %17 = vsyncadd [#allocation3], %s16
      %s19 = sshll.u32 [#allocation2], 4
      %s20 = int_to_ptr.vmem [resolvable:$true] %s19
      %22 = dma.hbm_to_vmem [thread:$0]  %s0, 128, %s20, [#allocation3]
    $region5: #{tpu_custom_call.1} parent=1 // pred_fallthru
      _
    // Predicated region
    $region6: #{tpu_custom_call.1} parent=1 // pred_check
      _
    $region7: #{tpu_custom_call.1} parent=1 // pred_check_branch
      %24 = sbr.rel (0) target = $region9
    $region8: #{tpu_custom_call.1} parent=1 // pred_region
      %s26 = ssub.s32 256, 256
      %27 = vsyncadd [#allocation6], %s26
      %s28 = sshll.u32 [#allocation5], 4
      %s29 = int_to_ptr.vmem [resolvable:$true] %s28
      %34 = dma.hbm_to_vmem [thread:$0]  %s1, 256, %s29, [#allocation6], 64, 64, 4
    $region9: #{tpu_custom_call.1} parent=1 // pred_fallthru
      _
    // Predicated region
    $region10: #{tpu_custom_call.1} parent=1 // pred_check
      _
    $region11: #{tpu_custom_call.1} parent=1 // pred_check_branch
      %36 = sbr.rel (0) target = $region13
    $region12: #{tpu_custom_call.1} parent=1 // pred_region
      _
    $region13: #{tpu_custom_call.1} parent=1 // pred_fallthru
      _
    // Predicated region
    $region14: #{tpu_custom_call.1} parent=1 // pred_check
      _
    $region15: #{tpu_custom_call.1} parent=1 // pred_check_branch
      %38 = sbr.rel (0) target = $region17
    $region16: #{tpu_custom_call.1} parent=1 // pred_region
      %s40 = ssub.s32 256, 256
      %41 = vsyncadd [#allocation6], %s40
      %s42 = sshll.u32 [#allocation7], 4
      %s43 = int_to_ptr.vmem [resolvable:$true] %s42
      %48 = dma.hbm_to_vmem [thread:$0]  %s3, 256, %s43, [#allocation6], 64, 64, 4
    $region17: #{tpu_custom_call.1} parent=1 // pred_fallthru
      _
    // Predicated region
    $region18: #{tpu_custom_call.1} parent=1 // pred_check
      _
    $region19: #{tpu_custom_call.1} parent=1 // pred_check_branch
      %50 = sbr.rel (0) target = $region21
    $region20: #{tpu_custom_call.1} parent=1 // pred_region
      _
    $region21: #{tpu_custom_call.1} parent=1 // pred_fallthru
      _
    // Predicated region
    $region22: #{tpu_custom_call.1} parent=1 // pred_check
      _
    $region23: #{tpu_custom_call.1} parent=1 // pred_check_branch
      %52 = sbr.rel (0) target = $region25
    $region24: #{tpu_custom_call.1} parent=1 // pred_region
      %53 = dma.done [#allocation3], 128
    $region25: #{tpu_custom_call.1} parent=1 // pred_fallthru
      _
    // Predicated region
    $region26: #{tpu_custom_call.1} parent=1 // pred_check
      _
    $region27: #{tpu_custom_call.1} parent=1 // pred_check_branch
      %55 = sbr.rel (0) target = $region29
    $region28: #{tpu_custom_call.1} parent=1 // pred_region
      %56 = dma.done [#allocation6], 256
    $region29: #{tpu_custom_call.1} parent=1 // pred_fallthru
      _
    // Predicated region
    $region30: #{tpu_custom_call.1} parent=1 // pred_check
      _
    $region31: #{tpu_custom_call.1} parent=1 // pred_check_branch
      %58 = sbr.rel (0) target = $region33
    $region32: #{tpu_custom_call.1} parent=1 // pred_region
      %59 = dma.done [#allocation6], 256
    $region33: #{tpu_custom_call.1} parent=1 // pred_fallthru
      _
    %v61 = vld [vmem:[#allocation2] sm:$0xff]
    %v62 = vpack.c.bf16 %v61, %v61
    %v63 = vld [vmem:[#allocation5] sm:$0xf]
    %v64 = vld [vmem:[#allocation5 + $0x4] sm:$0xf]
    %v65 = vld [vmem:[#allocation5 + $0x8] sm:$0xf]
    %v66 = vld [vmem:[#allocation5 + $0xc] sm:$0xf]
    %v67 = vld [vmem:[%s2] sm:$0x1]
    %v69 = vlaneseq
    %v70 = vshrl.u32 %v69, 7
    %v71 = vsub.s32 0, %v70
    %v72 = vrot.slane %v67, %v71
    %v78 = vunpack.c.l.b16 %v63
    %v79 = vunpack.c.l.b16 %v64
    %v80 = vunpack.c.l.b16 %v65
    %v81 = vunpack.c.l.b16 %v66
    %v82 = vpack.c.b16 %v79, %v78
    %v83 = vpack.c.b16 %v81, %v80
    %vm86 = vcmask 261120
    %v88 = vsel %vm86, %v62, 0
    %90 = vmatprep.subr.bf16.mxu0 0
    %91 = vmatpush1.bf16.msra.mxu0 %v82
    %92 = vmatprep.subr.bf16.mxu0 0
    %93 = vmatpush1.bf16.msra.mxu0 %v83
    %94 = vmatprep.subr.bf16.mxu0 0
    %95 = vmatpush1.bf16.msra.mxu0 0
    %96 = vmatprep.subr.bf16.mxu0 0
    %97 = vmatpush1.bf16.msra.mxu0 0
    %98 = vmatprep.subr.bf16.mxu0 0
    %99 = vmatpush1.bf16.msra.mxu0 0
    %100 = vmatprep.subr.bf16.mxu0 0
    %101 = vmatpush1.bf16.msra.mxu0 0
    %102 = vmatprep.subr.bf16.mxu0 0
    %103 = vmatpush1.bf16.msra.mxu0 0
    %104 = vmatprep.subr.bf16.mxu0 0
    %105 = vmatpush1.bf16.msra.mxu0 0
    %106 = vmatprep.subr.bf16.mxu0 0
    %107 = vmatpush1.bf16.msra.mxu0 0
    %108 = vmatprep.subr.bf16.mxu0 0
    %109 = vmatpush1.bf16.msra.mxu0 0
    %110 = vmatprep.subr.bf16.mxu0 0
    %111 = vmatpush1.bf16.msra.mxu0 0
    %112 = vmatprep.subr.bf16.mxu0 0
    %113 = vmatpush1.bf16.msra.mxu0 0
    %114 = vmatprep.subr.bf16.mxu0 0
    %115 = vmatpush1.bf16.msra.mxu0 0
    %116 = vmatprep.subr.bf16.mxu0 0
    %117 = vmatpush1.bf16.msra.mxu0 0
    %118 = vmatprep.subr.bf16.mxu0 0
    %119 = vmatpush1.bf16.msra.mxu0 0
    %120 = vmatprep.subr.bf16.mxu0 0
    %121 = vmatpush1.bf16.msra.mxu0 0
    %122 = vmatprep.mubr.bf16.mxu0 0
    %123 = vmatmul.mubr.bf16.gmra.mrb[0].mxu0 %v88
    %v124 = vpop.f32.mrb[0].mxu0
    %v125 = vadd.f32 %v72, %v124
    %v126 = vpop.f32.mrb[0].mxu0
    %v127 = vpop.f32.mrb[0].mxu0
    %v128 = vpop.f32.mrb[0].mxu0
    %129 = vdwg.mxu0
    %v130 = vtanh.pop %v125
    %v131 = vpack.c.bf16 %v130, %v130
    %v132 = vld [vmem:[#allocation7] sm:$0xf]
    %v133 = vld [vmem:[#allocation7 + $0x4] sm:$0xf]
    %v134 = vld [vmem:[#allocation7 + $0x8] sm:$0xf]
    %v135 = vld [vmem:[#allocation7 + $0xc] sm:$0xf]
    %v136 = vld [vmem:[%s4] sm:$0x1]
    %v138 = vlaneseq
    %v139 = vshrl.u32 %v138, 7
    %v140 = vsub.s32 0, %v139
    %v141 = vrot.slane %v136, %v140
    %v147 = vunpack.c.l.b16 %v132
    %v148 = vunpack.c.l.b16 %v133
    %v149 = vunpack.c.l.b16 %v134
    %v150 = vunpack.c.l.b16 %v135
    %v151 = vpack.c.b16 %v148, %v147
    %v152 = vpack.c.b16 %v150, %v149
    %v156 = vsel %vm86, %v131, 0
    %158 = vmatprep.subr.bf16.mxu0 0
    %159 = vmatpush1.bf16.msra.mxu0 %v151
    %160 = vmatprep.subr.bf16.mxu0 0
    %161 = vmatpush1.bf16.msra.mxu0 %v152
    %162 = vmatprep.subr.bf16.mxu0 0
    %163 = vmatpush1.bf16.msra.mxu0 0
    %164 = vmatprep.subr.bf16.mxu0 0
    %165 = vmatpush1.bf16.msra.mxu0 0
    %166 = vmatprep.subr.bf16.mxu0 0
    %167 = vmatpush1.bf16.msra.mxu0 0
    %168 = vmatprep.subr.bf16.mxu0 0
    %169 = vmatpush1.bf16.msra.mxu0 0
    %170 = vmatprep.subr.bf16.mxu0 0
    %171 = vmatpush1.bf16.msra.mxu0 0
    %172 = vmatprep.subr.bf16.mxu0 0
    %173 = vmatpush1.bf16.msra.mxu0 0
    %174 = vmatprep.subr.bf16.mxu0 0
    %175 = vmatpush1.bf16.msra.mxu0 0
    %176 = vmatprep.subr.bf16.mxu0 0
    %177 = vmatpush1.bf16.msra.mxu0 0
    %178 = vmatprep.subr.bf16.mxu0 0
    %179 = vmatpush1.bf16.msra.mxu0 0
    %180 = vmatprep.subr.bf16.mxu0 0
    %181 = vmatpush1.bf16.msra.mxu0 0
    %182 = vmatprep.subr.bf16.mxu0 0
    %183 = vmatpush1.bf16.msra.mxu0 0
    %184 = vmatprep.subr.bf16.mxu0 0
    %185 = vmatpush1.bf16.msra.mxu0 0
    %186 = vmatprep.subr.bf16.mxu0 0
    %187 = vmatpush1.bf16.msra.mxu0 0
    %188 = vmatprep.subr.bf16.mxu0 0
    %189 = vmatpush1.bf16.msra.mxu0 0
    %190 = vmatprep.mubr.bf16.mxu0 0
    %191 = vmatmul.mubr.bf16.gmra.mrb[0].mxu0 %v156
    %v192 = vpop.f32.mrb[0].mxu0
    %v193 = vadd.f32 %v141, %v192
    %v194 = vpop.f32.mrb[0].mxu0
    %v195 = vpop.f32.mrb[0].mxu0
    %v196 = vpop.f32.mrb[0].mxu0
    %197 = vdwg.mxu0
    %198 = vmax.xlane.f32.xlu0 %v193
    %v199 = vpop.xlane.xlu0 %198
    %v200 = vsub.f32 %v193, %v199
    %v201 = vmul.f32 %v200, 1.442695
    %v202 = vpow.pop %v201
    %203 = vadd.xlane.f32.xlu0 %v202
    %v204 = vpop.xlane.xlu0 %203
    %v205 = vrcp.pop %v204
    %v206 = vmul.f32 %v202, %v205
    %v207 = vpack.c.bf16 %v206, %v206
    %208 = vst [vmem:[#allocation8] sm:$0xf] %v207
    // Predicated region
    $region34: #{tpu_custom_call.1} parent=1 // pred_check
      _
    $region35: #{tpu_custom_call.1} parent=1 // pred_check_branch
      %210 = sbr.rel (0) target = $region37
    $region36: #{tpu_custom_call.1} parent=1 // pred_region
      %s212 = ssub.s32 64, 64
      %213 = vsyncadd [#allocation4], %s212
      %s215 = sshll.u32 [#allocation8], 4
      %s216 = int_to_ptr.vmem [resolvable:$true] %s215
      %218 = dma.vmem_to_hbm [thread:$0]  %s216, 64, %s5, [#allocation4]
    $region37: #{tpu_custom_call.1} parent=1 // pred_fallthru
      _
    // Predicated region
    $region38: #{tpu_custom_call.1} parent=1 // pred_check
      _
    $region39: #{tpu_custom_call.1} parent=1 // pred_check_branch
      %220 = sbr.rel (0) target = $region41
    $region40: #{tpu_custom_call.1} parent=1 // pred_region
      %221 = dma.done [#allocation4], 64
    $region41: #{tpu_custom_call.1} parent=1 // pred_fallthru
      _
    %222 = vsyncpa [#allocation3], 1
    %223 = vsyncpa [#allocation6], 1
    %224 = vsyncpa [#allocation4], 1

</llo_original>
